<compile_context>
chip_gen: v7x
topology: tpu7x:2x2x1
jax: 0.10.0
libtpu: 0.0.40
codegen_flags: <defaults>
</compile_context>

<pallas_src>
import functools

import jax
import jax.numpy as jnp
from jax.experimental import pallas as pl
from jax.experimental.pallas import tpu as pltpu

# VMEM budget covering double-buffered pipeline slabs + in-kernel f32 temporaries.
# Chosen for v7x's 64 MiB per-TC VMEM; v5e/v6e (128 MiB) have extra headroom.
_VMEM_BUDGET_BYTES = 40 * 1024 * 1024
_VMEM_LIMIT_BYTES = 48 * 1024 * 1024
_MIN_GRID_STEPS = 4   # keep >=4 grid steps so v7x's 2 TensorCores both get work


def _round_up(x, m):
    return ((x + m - 1) // m) * m


def _softmax_lastdim(x):
    """Numerically stable softmax along the lane (last) axis, f32 in/out."""
    m = jnp.max(x, axis=-1, keepdims=True)
    e = jnp.exp(x - m)
    s = jnp.sum(e, axis=-1, keepdims=True)
    r = pl.reciprocal(s, approx=True)      # EUP vrcp on a (rows, 1) slab
    r = r * (2.0 - s * r)                  # one Newton step -> ~f32 accuracy
    return e * r


# ---------------- deterministic path ----------------

def _det_kernel_static(x_ref, o_ref, *, inv_scale):
    x = x_ref[...].astype(jnp.float32) * inv_scale
    o_ref[...] = _softmax_lastdim(x).astype(o_ref.dtype)


def _det_kernel_dyn(scale_ref, x_ref, o_ref):
    x = x_ref[...].astype(jnp.float32) * scale_ref[0]
    o_ref[...] = _softmax_lastdim(x).astype(o_ref.dtype)


# ---------------- stochastic (rsample) path ----------------

def _sample_kernel_static(x_ref, g_ref, o_ref, *, inv_gamma, inv_temp):
    x = (x_ref[...].astype(jnp.float32) * inv_gamma
         + g_ref[...].astype(jnp.float32)) * inv_temp
    o_ref[...] = _softmax_lastdim(x).astype(o_ref.dtype)


def _sample_kernel_dyn(inv_temp_ref, x_ref, g_ref, o_ref, *, inv_gamma):
    x = (x_ref[...].astype(jnp.float32) * inv_gamma
         + g_ref[...].astype(jnp.float32)) * inv_temp_ref[0]
    o_ref[...] = _softmax_lastdim(x).astype(o_ref.dtype)


# ---------------- tiling helper ----------------

def _pick_rows(batch, feat, n_streamed):
    """Rows per tile: as large as the VMEM budget allows, 8-aligned, but keep
    >= _MIN_GRID_STEPS grid steps when the batch permits (v7x megacore)."""
    # Per grid step: 2 pipeline buffers per streamed operand + ~3 tile-sized
    # f32 temporaries (cast, exp slab, normalized result).  Budget with f32
    # itemsize so bf16 inputs don't under-count the temps.
    slab_bytes = _VMEM_BUDGET_BYTES // (2 * n_streamed + 3)
    rows = max(8, (slab_bytes // (feat * 4)) // 8 * 8)
    rows = min(rows, max(8, _round_up(pl.cdiv(batch, _MIN_GRID_STEPS), 8)))
    rows = min(rows, _round_up(batch, 8))
    return rows


# ---------------- wrapper ----------------

def concrete_selector(logits, temp, *, deterministic=False, key=None, gamma=0.2):
    """JAX/Pallas equivalent of ConcreteSelector.forward (softmax over last dim)."""
    orig_shape = logits.shape
    feat = orig_shape[-1]
    x2 = logits.reshape(-1, feat)
    batch = x2.shape[0]

    smem_spec = pl.BlockSpec(memory_space=pltpu.MemorySpace.SMEM)
    temp_is_static = isinstance(temp, (int, float))

    if deterministic:
        n_streamed = 2      # logits in, probs out
    else:
        if key is None:
            raise ValueError("key is required for the stochastic (rsample) path")
        n_streamed = 3      # logits in, gumbel noise in, probs out

    rows = _pick_rows(batch, feat, n_streamed)
    grid = (pl.cdiv(batch, rows),)
    # Last block dim == full feature dim, so no lane padding is needed; edge
    # (partial) row blocks are masked by Mosaic -- no wrapper pad/slice passes.
    tile_spec = pl.BlockSpec((rows, feat), lambda i: (i, 0))
    out_shape = jax.ShapeDtypeStruct((batch, feat), logits.dtype)
    cparams = pltpu.CompilerParams(
        dimension_semantics=("parallel",),
        vmem_limit_bytes=_VMEM_LIMIT_BYTES,
    )

    if deterministic:
        if temp_is_static:
            kernel = functools.partial(_det_kernel_static,
                                       inv_scale=float(1.0 / (gamma * temp)))
            in_specs, args = [tile_spec], (x2,)
        else:
            scale = jnp.reshape(1.0 / (gamma * jnp.asarray(temp, jnp.float32)), (1,))
            kernel = _det_kernel_dyn
            in_specs, args = [smem_spec, tile_spec], (scale, x2)
    else:
        # Gumbel noise streamed from HBM (works on TPU and in interpret mode).
        g = jax.random.gumbel(key, x2.shape, dtype=jnp.float32)
        if temp_is_static:
            kernel = functools.partial(_sample_kernel_static,
                                       inv_gamma=float(1.0 / gamma),
                                       inv_temp=float(1.0 / temp))
            in_specs, args = [tile_spec, tile_spec], (x2, g)
        else:
            inv_t = jnp.reshape(1.0 / jnp.asarray(temp, jnp.float32), (1,))
            kernel = functools.partial(_sample_kernel_dyn,
                                       inv_gamma=float(1.0 / gamma))
            in_specs, args = [smem_spec, tile_spec, tile_spec], (inv_t, x2, g)

    out = pl.pallas_call(
        kernel,
        out_shape=out_shape,
        grid=grid,
        in_specs=in_specs,
        out_specs=tile_spec,
        compiler_params=cparams,
    )(*args)

    return out.reshape(orig_shape)


if __name__ == "__main__":
    key = jax.random.PRNGKey(0)
    k_logits, k_noise, k_logits3, k_noise3 = jax.random.split(key, 4)

    # Deliberately not a multiple of 128 in features (masked lane tail).
    batch, num_features = 64, 100
    logits = jax.random.normal(k_logits, (batch, num_features), dtype=jnp.float32)
    temp, gamma = 0.5, 0.2

    # deterministic path (static temp -> baked scale, no SMEM operand)
    out_det = concrete_selector(logits, temp, deterministic=True, gamma=gamma)
    out_det = jax.block_until_ready(out_det)

    # stochastic (rsample) path
    out_smp = concrete_selector(logits, temp, deterministic=False,
                                key=k_noise, gamma=gamma)
    out_smp = jax.block_until_ready(out_smp)

    # deterministic path with a traced temp (SMEM scalar path), under jit
    out_dyn = jax.jit(
        lambda t: concrete_selector(logits, t, deterministic=True, gamma=gamma)
    )(jnp.float32(temp))
    out_dyn = jax.block_until_ready(out_dyn)

    # 3-D logits with a flattened batch (14) that is not a multiple of the row
    # tile -> exercises the masked edge block (no wrapper-side pad/slice).
    logits3 = jax.random.normal(k_logits3, (2, 7, num_features), dtype=jnp.float32)
    out3_det = concrete_selector(logits3, temp, deterministic=True, gamma=gamma)
    out3_smp = concrete_selector(logits3, temp, deterministic=False,
                                 key=k_noise3, gamma=gamma)
    out3_det = jax.block_until_ready(out3_det)
    out3_smp = jax.block_until_ready(out3_smp)

    # sanity checks
    ref_det = jax.nn.softmax(logits / (gamma * temp), axis=-1)
    ref3_det = jax.nn.softmax(logits3 / (gamma * temp), axis=-1)
    assert out_det.shape == logits.shape and out_smp.shape == logits.shape
    assert out3_det.shape == logits3.shape and out3_smp.shape == logits3.shape
    assert jnp.allclose(out_det, ref_det, atol=2e-5), "deterministic mismatch"
    assert jnp.allclose(out_dyn, ref_det, atol=2e-5), "traced-temp mismatch"
    assert jnp.allclose(out3_det, ref3_det, atol=2e-5), "3-D deterministic mismatch"

    # sample path: exact cross-check against a pure-JAX reference using the same
    # gumbel noise the wrapper draws from `key`
    g_ref = jax.random.gumbel(k_noise, logits.shape, dtype=jnp.float32)
    ref_smp = jax.nn.softmax((logits / gamma + g_ref) / temp, axis=-1)
    assert jnp.allclose(out_smp, ref_smp, atol=2e-5), "sample-path mismatch"

    assert jnp.allclose(jnp.sum(out_smp, axis=-1), 1.0, atol=1e-4)
    assert jnp.allclose(jnp.sum(out3_smp, axis=-1), 1.0, atol=1e-4)
    assert bool(jnp.all(out_smp >= 0.0)) and bool(jnp.all(jnp.isfinite(out_smp)))
    assert bool(jnp.all(out3_smp >= 0.0)) and bool(jnp.all(jnp.isfinite(out3_smp)))

    print("KERNEL_OK")
</pallas_src>

<mosaic_0001>
module attributes {stable_mosaic.version = 11 : i64} {
  func.func @_det_kernel_static(%arg0: i32, %arg1: memref<16x100xf32, #tpu.memory_space<vmem>>, %arg2: memref<16x100xf32, #tpu.memory_space<vmem>>) attributes {dimension_semantics = [#tpu.dimension_semantics<parallel>], iteration_bounds = array<i64: 4>, scalar_prefetch = 0 : i64, scratch_operands = 0 : i64, tpu.core_type = #tpu.core_type<tc>, window_params = [{transform_indices = @transform_0, window_bounds = array<i64: 16, 100>}, {transform_indices = @transform_1, window_bounds = array<i64: 16, 100>}]} {
    %c0 = arith.constant 0 : index
    %c0_0 = arith.constant 0 : index
    %0 = vector.load %arg1[%c0, %c0_0] : memref<16x100xf32, #tpu.memory_space<vmem>>, vector<16x100xf32>
    %cst = arith.constant 1.000000e+01 : f32
    %1 = vector.broadcast %cst : f32 to vector<16x100xf32>
    %2 = arith.mulf %0, %1 : vector<16x100xf32>
    %cst_1 = arith.constant dense<0xFF800000> : vector<16xf32>
    %3 = vector.multi_reduction <maximumf>, %2, %cst_1 [1] : vector<16x100xf32> to vector<16xf32>
    %4 = vector.shape_cast %3 : vector<16xf32> to vector<16x1xf32>
    %5 = vector.broadcast %4 : vector<16x1xf32> to vector<16x100xf32>
    %6 = arith.subf %2, %5 : vector<16x100xf32>
    %7 = math.exp %6 : vector<16x100xf32>
    %cst_2 = arith.constant dense<0.000000e+00> : vector<16xf32>
    %8 = vector.multi_reduction <add>, %7, %cst_2 [1] : vector<16x100xf32> to vector<16xf32>
    %9 = vector.shape_cast %8 : vector<16xf32> to vector<16x1xf32>
    %10 = tpu.reciprocal %9 {approx = true} : vector<16x1xf32> -> vector<16x1xf32>
    %11 = arith.mulf %9, %10 : vector<16x1xf32>
    %cst_3 = arith.constant 2.000000e+00 : f32
    %12 = vector.broadcast %cst_3 : f32 to vector<16x1xf32>
    %13 = arith.subf %12, %11 : vector<16x1xf32>
    %14 = arith.mulf %10, %13 : vector<16x1xf32>
    %15 = vector.broadcast %14 : vector<16x1xf32> to vector<16x100xf32>
    %16 = arith.mulf %7, %15 : vector<16x100xf32>
    %c0_4 = arith.constant 0 : index
    %c0_5 = arith.constant 0 : index
    %17 = vector.load %arg2[%c0_4, %c0_5] : memref<16x100xf32, #tpu.memory_space<vmem>>, vector<16x100xf32>
    tpu.vector_store %arg2[%c0_4, %c0_5], %16 {strides = array<i32>} : memref<16x100xf32, #tpu.memory_space<vmem>>, vector<16x100xf32>,
    return
  }
  func.func @transform_0(%arg0: i32) -> (i32, i32) {
    %c0_i32 = arith.constant 0 : i32
    %c0_i32_0 = arith.constant 0 : i32
    return %arg0, %c0_i32 : i32, i32
  }
  func.func @transform_1(%arg0: i32) -> (i32, i32) {
    %c0_i32 = arith.constant 0 : i32
    %c0_i32_0 = arith.constant 0 : i32
    return %arg0, %c0_i32 : i32, i32
  }
}

</mosaic_0001>

<llo_original>
// kernel: tpu_custom_call.1
$region0: #{tpu_custom_call.1}
  #allocation0 [shape = 'u32[]', space=smem, size = 0x4, offset = 0x4, fixed_abs, tag = 'smem constant byte address 0x4 - core index']
  #allocation1 [shape = 'u32[144,128]{1,0:T(1,128)}', space=vmem, size = 0x12000, scoped, tag = 'internal scratch']
  %s0 = inlined_call_operand.hbm [shape: f32[64,100], index: 0, kind: input, shape index: {}]
  %s1 = inlined_call_operand.hbm [shape: f32[64,100], index: 1, kind: output, shape index: {}]
  %s2 = sld [smem:[#allocation0]]
  $region41: #{tpu_custom_call.1} parent=0
    _
  %s4 = ssub.s32 1, %s2
  %s5 = scalar_select 0, %s4, %s2
  $region1: #{tpu_custom_call.1} parent=0
    #allocation2 [shape = 'u8[16384]{0}', space=vmem, size = 0x4000, scoped, tag = 'input window, operand 0']
    #allocation3 [shape = 's32[2]{0}', space=sflag, size = 0x8, scoped, tag = 'scoped memory for tpu_custom_call.1']
    #allocation4 [shape = 's32[2]{0}', space=sflag, size = 0x8, scoped, tag = 'scoped memory for tpu_custom_call.1']
    #allocation5 [shape = 'u8[16384]{0}', space=vmem, size = 0x4000, scoped, tag = 'output window, operand 0']
    %6 = vsyncpa [#allocation3], 0
    %s7 = scalar_lea.sflag [#allocation3], 1
    %8 = vsyncpa %s7, 0
    %9 = vsyncpa [#allocation4], 0
    %s10 = scalar_lea.sflag [#allocation4], 1
    %11 = vsyncpa %s10, 0
    loop: start=0, step=1, limit=6
    $region2: #{tpu_custom_call.1} parent=1 // loop_pre_header
      _
    $region3: #{tpu_custom_call.1} parent=1 // loop_header
      %s13 = sphi 0, %s17
      %p14 = scmp.ge.s32.totalorder %s13, 6
      %s23 = sphi 0, %s25
      %s26 = sphi 0, %s23
      %s27 = sphi 0, %s26
      %s43 = sphi 0, %s27
      %s49 = sphi 0, %s51
      %s52 = sphi 0, %s49
      %s53 = sphi 0, %s52
      %s69 = sphi 0, %s53
    $region4: #{tpu_custom_call.1} parent=1 // loop_header_branch
      %16 = sbr.rel (%p14) target = $region8
    $region5: #{tpu_custom_call.1} parent=1 // loop_body
      %s18 = ssub.s32 %s13, 1
      %s19 = ssub.s32 %s13, 2
      %s20 = sadd.s32 %s13, 1
      %s21 = ssub.s32 %s13, %s20
      %p22 = scmp.eq.s32.totalorder %s21, 0
      %s24 = sadd.s32 %s23, 1
      %s25 = scalar_select %p22, %s23, %s24
      %p28 = pneg %p22
      %p29 = scmp.eq.s32.totalorder %s13, 3
      %p30 = por %p28, %p29
      %p31 = scmp.ne.s32.totalorder %s23, %s26
      %p32 = scmp.eq.s32.totalorder %s13, 0
      %p33 = por %p31, %p32
      %p34 = scmp.ne.s32.totalorder %s23, %s26
      %p35 = scmp.eq.s32.totalorder %s18, 3
      %p36 = por %p34, %p35
      %p37 = scmp.ne.s32.totalorder %s26, %s27
      %p38 = scmp.eq.s32.totalorder %s18, 0
      %p39 = por %p37, %p38
      %p40 = scmp.ne.s32.totalorder %s26, %s27
      %p41 = scmp.eq.s32.totalorder %s19, 3
      %p42 = por %p40, %p41
      %p44 = scmp.ne.s32.totalorder %s27, %s43
      %p45 = scmp.eq.s32.totalorder %s19, 0
      %p46 = por %p44, %p45
      %s47 = ssub.s32 %s13, %s20
      %p48 = scmp.eq.s32.totalorder %s47, 0
      %s50 = sadd.s32 %s49, 1
      %s51 = scalar_select %p48, %s49, %s50
      %p54 = pneg %p48
      %p55 = scmp.eq.s32.totalorder %s13, 3
      %p56 = por %p54, %p55
      %p57 = scmp.ne.s32.totalorder %s49, %s52
      %p58 = scmp.eq.s32.totalorder %s13, 0
      %p59 = por %p57, %p58
      %p60 = scmp.ne.s32.totalorder %s49, %s52
      %p61 = scmp.eq.s32.totalorder %s18, 3
      %p62 = por %p60, %p61
      %p63 = scmp.ne.s32.totalorder %s52, %s53
      %p64 = scmp.eq.s32.totalorder %s18, 0
      %p65 = por %p63, %p64
      %p66 = scmp.ne.s32.totalorder %s52, %s53
      %p67 = scmp.eq.s32.totalorder %s19, 3
      %p68 = por %p66, %p67
      %p70 = scmp.ne.s32.totalorder %s53, %s69
      %p71 = scmp.eq.s32.totalorder %s19, 0
      %p72 = por %p70, %p71
      %p73 = scmp.le.s32.totalorder 1, %s13
      %p74 = scmp.lt.s32.totalorder %s13, 5
      %p75 = pnand %p73, %p74
      %p76 = pneg %p75
      // Predicated region
      $region9: #{tpu_custom_call.1} parent=5 // pred_check
        _
      $region10: #{tpu_custom_call.1} parent=5 // pred_check_branch
        %78 = sbr.rel (%p75) target = $region12
      $region11: #{tpu_custom_call.1} parent=5 // pred_region
        %s79 = ssub.s32 %s13, 1
      $region12: #{tpu_custom_call.1} parent=5 // pred_fallthru
        _
      %p80 = scmp.lt.s32.totalorder %s13, 4
      // Predicated region
      $region13: #{tpu_custom_call.1} parent=5 // pred_check
        %p81 = pneg %p80
      $region14: #{tpu_custom_call.1} parent=5 // pred_check_branch
        %83 = sbr.rel (%p81) target = $region16
      $region15: #{tpu_custom_call.1} parent=5 // pred_region
        // Predicated region
        $region17: #{tpu_custom_call.1} parent=15 // pred_check
          %p84 = pneg %p33
        $region18: #{tpu_custom_call.1} parent=15 // pred_check_branch
          %86 = sbr.rel (%p84) target = $region20
        $region19: #{tpu_custom_call.1} parent=15 // pred_region
          %s87 = sand.u32 %s23, 1
          %s88 = scalar_lea.sflag [#allocation3], %s87
          %s89 = sand.u32 %s23, 1
          %s90 = smul.addr %s89, 16
          %s91 = scalar_lea.vmem [#allocation2], %s90
          %s92 = smul.u32 2, %s13
          %s94 = ssub.s32 256, 256
          %95 = vsyncadd %s88, %s94
          %s96 = smul.addr %s92, 128
          %s97 = scalar_lea.hbm %s0, %s96
          %s98 = sshll.u32 %s91, 4
          %s99 = int_to_ptr.vmem [resolvable:$true] %s98
          %104 = dma.hbm_to_vmem [thread:$0]  %s97, 256, %s99, %s88, 128, 128, 8
        $region20: #{tpu_custom_call.1} parent=15 // pred_fallthru
          _
      $region16: #{tpu_custom_call.1} parent=5 // pred_fallthru
        _
      %p105 = scmp.le.s32.totalorder 1, %s13
      %p106 = scmp.lt.s32.totalorder %s13, 5
      %p107 = pnand %p105, %p106
      %p108 = pneg %p107
      // Predicated region
      $region21: #{tpu_custom_call.1} parent=5 // pred_check
        _
      $region22: #{tpu_custom_call.1} parent=5 // pred_check_branch
        %110 = sbr.rel (%p107) target = $region24
      $region23: #{tpu_custom_call.1} parent=5 // pred_region
        %s111 = ssub.s32 %s13, 1
        %s112 = sand.u32 %s26, 1
        %s113 = scalar_lea.sflag [#allocation3], %s112
        %s114 = sand.u32 %s26, 1
        %s115 = smul.addr %s114, 16
        %s116 = scalar_lea.vmem [#allocation2], %s115
        // Predicated region
        $region25: #{tpu_custom_call.1} parent=23 // pred_check
          %p117 = pneg %p39
        $region26: #{tpu_custom_call.1} parent=23 // pred_check_branch
          %119 = sbr.rel (%p117) target = $region28
        $region27: #{tpu_custom_call.1} parent=23 // pred_region
          %120 = dma.done %s113, 256
        $region28: #{tpu_custom_call.1} parent=23 // pred_fallthru
          _
        %s121 = sand.u32 %s26, 1
        %s122 = scalar_lea.sflag [#allocation3], %s121
        %s123 = sand.u32 %s26, 1
        %s124 = smul.addr %s123, 16
        %s125 = scalar_lea.vmem [#allocation2], %s124
        %p126 = pneg %p39
        %p127 = pneg %p36
        %p128 = pneg %p65
        %p129 = pneg %p62
        %s130 = sand.u32 %s52, 1
        %s131 = scalar_lea.sflag [#allocation4], %s130
        %s132 = sand.u32 %s52, 1
        %s133 = smul.addr %s132, 16
        %s134 = scalar_lea.vmem [#allocation5], %s133
        %s135 = smul.u32 2, %s18
        %s136 = smul.u32 2, %s18
        %v137 = vld [vmem:[%s116] sm:$0xff]
        %v138 = vld [vmem:[%s116 + $0x8] sm:$0xff]
        %v139 = vmul.f32 %v137, 10.0
        %v140 = vmul.f32 %v138, 10.0
        %vm141 = vcmask 818176
        %v142 = vsel %vm141, %v139, -inf
        %143 = vmax.xlane.f32.xlu0 %v142
        %v144 = vpop.xlane.xlu0 %143
        %v145 = vsel %vm141, %v140, -inf
        %146 = vmax.xlane.f32.xlu0 %v145
        %v147 = vpop.xlane.xlu0 %146
        %v148 = vsub.f32 %v139, %v144
        %v149 = vsub.f32 %v140, %v147
        %v150 = vmul.f32 %v148, 1.442695
        %v151 = vpow.pop %v150
        %v152 = vmul.f32 %v149, 1.442695
        %v153 = vpow.pop %v152
        %v154 = vsel %vm141, %v151, 0.0
        %155 = vadd.xlane.f32.xlu0 %v154
        %v156 = vpop.xlane.xlu0 %155
        %v157 = vsel %vm141, %v153, 0.0
        %158 = vadd.xlane.f32.xlu0 %v157
        %v159 = vpop.xlane.xlu0 %158
        %v160 = vrcp.pop %v156
        %v161 = vrcp.pop %v159
        %v162 = vmul.f32 %v156, %v160
        %v163 = vmul.f32 %v159, %v161
        %v164 = vsub.f32 2.0, %v162
        %v165 = vsub.f32 2.0, %v163
        %v166 = vmul.f32 %v160, %v164
        %v167 = vmul.f32 %v161, %v165
        %v168 = vmul.f32 %v151, %v166
        %v169 = vmul.f32 %v153, %v167
        %170 = vst.msk [vmem:[%s134] sm:$0xff] %vm141, %v168
        %171 = vst.msk [vmem:[%s134 + $0x8] sm:$0xff] %vm141, %v169
        %s172 = sand.u32 %s52, 1
        %s173 = scalar_lea.sflag [#allocation4], %s172
        %s174 = sand.u32 %s52, 1
        %s175 = smul.addr %s174, 16
        %s176 = scalar_lea.vmem [#allocation5], %s175
        // Predicated region
        $region29: #{tpu_custom_call.1} parent=23 // pred_check
          %p177 = pneg %p62
        $region30: #{tpu_custom_call.1} parent=23 // pred_check_branch
          %179 = sbr.rel (%p177) target = $region32
        $region31: #{tpu_custom_call.1} parent=23 // pred_region
          %s180 = smul.u32 2, %s18
          %s182 = ssub.s32 256, 256
          %183 = vsyncadd %s173, %s182
          %s184 = smul.addr %s180, 128
          %s185 = scalar_lea.hbm %s1, %s184
          %s186 = sshll.u32 %s176, 4
          %s187 = int_to_ptr.vmem [resolvable:$true] %s186
          %192 = dma.vmem_to_hbm [thread:$0]  %s187, 256, %s185, %s173, 128, 128, 8
        $region32: #{tpu_custom_call.1} parent=23 // pred_fallthru
          _
      $region24: #{tpu_custom_call.1} parent=5 // pred_fallthru
        _
      %p193 = scmp.le.s32.totalorder 2, %s13
      // Predicated region
      $region33: #{tpu_custom_call.1} parent=5 // pred_check
        %p194 = pneg %p193
      $region34: #{tpu_custom_call.1} parent=5 // pred_check_branch
        %196 = sbr.rel (%p194) target = $region36
      $region35: #{tpu_custom_call.1} parent=5 // pred_region
        %s197 = ssub.s32 %s13, 2
        // Predicated region
        $region37: #{tpu_custom_call.1} parent=35 // pred_check
          %p198 = pneg %p68
        $region38: #{tpu_custom_call.1} parent=35 // pred_check_branch
          %200 = sbr.rel (%p198) target = $region40
        $region39: #{tpu_custom_call.1} parent=35 // pred_region
          %s201 = sand.u32 %s53, 1
          %s202 = scalar_lea.sflag [#allocation4], %s201
          %s203 = sand.u32 %s53, 1
          %s204 = smul.addr %s203, 16
          %s205 = scalar_lea.vmem [#allocation5], %s204
          %206 = dma.done %s202, 256
        $region40: #{tpu_custom_call.1} parent=35 // pred_fallthru
          _
      $region36: #{tpu_custom_call.1} parent=5 // pred_fallthru
        _
    $region6: #{tpu_custom_call.1} parent=1 // loop_footer
      %s17 = sadd.s32 1, %s13
    $region7: #{tpu_custom_call.1} parent=1 // loop_footer_branch
      %12 = sbr.rel target = $region3
    $region8: #{tpu_custom_call.1} parent=1 // loop_exit
      _
    %207 = vsyncpa [#allocation3], 1
    %s208 = scalar_lea.sflag [#allocation3], 1
    %209 = vsyncpa %s208, 1
    %210 = vsyncpa [#allocation4], 1
    %s211 = scalar_lea.sflag [#allocation4], 1
    %212 = vsyncpa %s211, 1

</llo_original>
